<compile_context>
chip_gen: v7x
topology: tpu7x:2x2x1
jax: 0.10.0
libtpu: 0.0.40
codegen_flags: <defaults>
</compile_context>

<pallas_src>
import jax
import jax.numpy as jnp
from jax import lax
from jax.experimental import pallas as pl
from jax.experimental.pallas import tpu as pltpu


# ----------------------------- kernels --------------------------------------


def _se_block_fused_kernel(x_ref, w1t_ref, w2t_ref, o_ref):
    # Squeeze: spatial sum with f32 accumulation (1/HW is folded into w1t).
    pooled = jnp.sum(x_ref[...], axis=-1, dtype=jnp.float32)            # (Nb, C)
    # Excitation: tiny matmuls, hidden under the HBM DMA stream.
    h = jnp.dot(pooled, w1t_ref[...], preferred_element_type=jnp.float32)
    h = 0.5 * h * (1.0 + lax.erf(h * 0.7071067811865476))               # exact GELU
    s = jax.nn.sigmoid(
        jnp.dot(h, w2t_ref[...], preferred_element_type=jnp.float32))   # (Nb, C)
    # Scale: re-read the tile from VMEM (cheap vld, data resident) so the
    # compiler doesn't keep a multi-MiB value live across the excitation.
    o_ref[...] = (x_ref[...] * s[:, :, None].astype(o_ref.dtype)).astype(o_ref.dtype)


def _pool_scale_kernel(x_ref, w1t_ref, w2t_ref, s_ref, acc_ref):
    # Pass 1 of the tiled path: accumulate the pooled sum over HW tiles, then
    # compute the excitation scale on the final tile.
    k = pl.program_id(1)

    @pl.when(k == 0)
    def _():
        acc_ref[...] = jnp.zeros_like(acc_ref)

    acc_ref[...] += jnp.sum(x_ref[...], axis=-1, dtype=jnp.float32)     # (1, C)

    @pl.when(k == pl.num_programs(1) - 1)
    def _():
        h = jnp.dot(acc_ref[...], w1t_ref[...],
                    preferred_element_type=jnp.float32)                 # (1, Cr)
        h = 0.5 * h * (1.0 + lax.erf(h * 0.7071067811865476))
        s = jax.nn.sigmoid(
            jnp.dot(h, w2t_ref[...], preferred_element_type=jnp.float32))
        s_ref[...] = s[:, :, None]                                      # (1, C, 1)


def _scale_kernel(x_ref, s_ref, o_ref):
    # Pass 2 of the tiled path: broadcast the scale over one HW tile.
    o_ref[...] = (x_ref[...] * s_ref[...].astype(o_ref.dtype)).astype(o_ref.dtype)


# ----------------------------- tiling helpers --------------------------------


def _vmem_budgets():
    """(block budget bytes, vmem_limit_bytes) chosen per TPU generation."""
    try:
        cap = int(pltpu.get_tpu_info().vmem_capacity_bytes)
    except Exception:
        cap = 64 << 20  # be conservative (v7x-sized)
    if cap >= (100 << 20):          # v5e / v6e: 128 MiB of VMEM
        return 14 << 20, 80 << 20
    return 7 << 20, 48 << 20        # v7x: 64 MiB physical VMEM


def _choose_nb(n, per_sample_bytes, budget_bytes, target_steps=4):
    """Samples per grid step: the largest nb whose block fits the budget, but
    small enough that the grid has >= target_steps steps (>= 2 per v7x
    TensorCore) whenever the batch allows it. Does NOT need to divide n."""
    nb_budget = max(1, budget_bytes // max(per_sample_bytes, 1))
    nb_grid = max(1, n // target_steps)
    return int(max(1, min(n, nb_budget, nb_grid)))


def _pick_hw_tile(hwp, c, itemsize, budget_bytes):
    """Largest 128-multiple divisor of hwp whose (1, C, tile) block fits."""
    assert hwp % 128 == 0
    units = hwp // 128
    best = 1
    for k in range(1, units + 1):
        if units % k == 0 and c * (128 * k) * itemsize <= budget_bytes:
            best = k
    return 128 * best


# ----------------------------- pallas_call wrappers ---------------------------


def _se_block_fused(x_flat, w1t, w2t, budget, vmem_limit):
    N, C, HWp = x_flat.shape
    Cr = w1t.shape[1]
    itemsize = x_flat.dtype.itemsize

    nb = _choose_nb(N, C * HWp * itemsize, budget)
    Np = -(-N // nb) * nb
    if Np != N:
        # Rows are independent; zero rows produce zero outputs, sliced off below.
        x_flat = jnp.pad(x_flat, ((0, Np - N), (0, 0), (0, 0)))

    out = pl.pallas_call(
        _se_block_fused_kernel,
        out_shape=jax.ShapeDtypeStruct((Np, C, HWp), x_flat.dtype),
        grid_spec=pltpu.PrefetchScalarGridSpec(
            num_scalar_prefetch=0,
            grid=(Np // nb,),
            in_specs=[
                # Last two block dims equal the full array dims (C, HWp) so the
                # (8,128) constraint is satisfied for any C / HWp.
                pl.BlockSpec((nb, C, HWp), lambda n: (n, 0, 0)),
                pl.BlockSpec((C, Cr), lambda n: (0, 0)),
                pl.BlockSpec((Cr, C), lambda n: (0, 0)),
            ],
            out_specs=pl.BlockSpec((nb, C, HWp), lambda n: (n, 0, 0)),
        ),
        compiler_params=pltpu.CompilerParams(
            dimension_semantics=("parallel",),
            vmem_limit_bytes=vmem_limit,
        ),
    )(x_flat, w1t, w2t)

    return out[:N] if Np != N else out


def _se_block_tiled(x_flat, w1t, w2t, budget, vmem_limit):
    """Two-pass path for samples whose (C, HW) slab exceeds the block budget."""
    N, C, HWp = x_flat.shape
    Cr = w1t.shape[1]
    itemsize = x_flat.dtype.itemsize
    assert HWp % 128 == 0  # guaranteed by the wrapper's padding rule

    hw_tile = _pick_hw_tile(HWp, C, itemsize, budget)
    n_hw = HWp // hw_tile

    # Pass 1: pooled sum over HW tiles (reduction axis last, "arbitrary"),
    # excitation scale emitted on the final tile.
    s = pl.pallas_call(
        _pool_scale_kernel,
        out_shape=jax.ShapeDtypeStruct((N, C, 1), jnp.float32),
        grid_spec=pltpu.PrefetchScalarGridSpec(
            num_scalar_prefetch=0,
            grid=(N, n_hw),
            in_specs=[
                pl.BlockSpec((1, C, hw_tile), lambda n, k: (n, 0, k)),
                pl.BlockSpec((C, Cr), lambda n, k: (0, 0)),
                pl.BlockSpec((Cr, C), lambda n, k: (0, 0)),
            ],
            out_specs=pl.BlockSpec((1, C, 1), lambda n, k: (n, 0, 0)),
            scratch_shapes=[pltpu.VMEM((1, C), jnp.float32)],
        ),
        compiler_params=pltpu.CompilerParams(
            dimension_semantics=("parallel", "arbitrary"),
            vmem_limit_bytes=vmem_limit,
        ),
    )(x_flat, w1t, w2t)

    # Pass 2: apply the scale per HW tile (fully parallel).
    out = pl.pallas_call(
        _scale_kernel,
        out_shape=jax.ShapeDtypeStruct((N, C, HWp), x_flat.dtype),
        grid_spec=pltpu.PrefetchScalarGridSpec(
            num_scalar_prefetch=0,
            grid=(N, n_hw),
            in_specs=[
                pl.BlockSpec((1, C, hw_tile), lambda n, k: (n, 0, k)),
                pl.BlockSpec((1, C, 1), lambda n, k: (n, 0, 0)),
            ],
            out_specs=pl.BlockSpec((1, C, hw_tile), lambda n, k: (n, 0, k)),
        ),
        compiler_params=pltpu.CompilerParams(
            dimension_semantics=("parallel", "parallel"),
            vmem_limit_bytes=vmem_limit,
        ),
    )(x_flat, s)

    return out


def se_block(x, w1, w2, *, budget_bytes=None):
    """x: (N, C, H, W); w1: (C//red, C); w2: (C, C//red). Returns (N, C, H, W)."""
    N, C, H, W = x.shape
    Cr = w1.shape[0]
    assert w1.shape == (Cr, C) and w2.shape == (C, Cr)

    HW = H * W
    budget, vmem_limit = _vmem_budgets()
    if budget_bytes is not None:
        budget = budget_bytes

    # Fold constants in the wrapper: transpose once, cast to f32 once, and
    # fold the 1/HW of the spatial mean into w1^T.
    inv_hw = 1.0 / float(HW)
    w1t = jnp.transpose(w1).astype(jnp.float32) * jnp.float32(inv_hw)   # (C, Cr)
    w2t = jnp.transpose(w2).astype(jnp.float32)                         # (Cr, C)

    x_flat = x.reshape(N, C, HW)  # free: NCHW is contiguous over (H, W)

    itemsize = x.dtype.itemsize
    needs_tiling = C * HW * itemsize > budget

    # Lane density: pad HW to a multiple of 128 when the tiled path needs it,
    # or when the overhead is small (<= 12.5%). Zero columns do not change the
    # pooled sum (the mean divides by the real HW via the folded 1/HW).
    pad_hw = (-HW) % 128
    if pad_hw and (needs_tiling or pad_hw * 8 <= HW):
        x_flat = jnp.pad(x_flat, ((0, 0), (0, 0), (0, pad_hw)))
    HWp = x_flat.shape[-1]

    if needs_tiling:
        out_flat = _se_block_tiled(x_flat, w1t, w2t, budget, vmem_limit)
    else:
        out_flat = _se_block_fused(x_flat, w1t, w2t, budget, vmem_limit)

    if HWp != HW:
        out_flat = out_flat[:, :, :HW]
    return out_flat.reshape(N, C, H, W)


# ----------------------------- reference & test ------------------------------


def se_block_reference(x, w1, w2):
    """Pure-JAX reference for correctness check."""
    pooled = jnp.mean(x.astype(jnp.float32), axis=(2, 3))               # (N, C)
    h = pooled @ w1.astype(jnp.float32).T                               # (N, Cr)
    h = 0.5 * h * (1.0 + lax.erf(h / jnp.sqrt(2.0)))                    # exact GELU
    s = jax.nn.sigmoid(h @ w2.astype(jnp.float32).T)                    # (N, C)
    return x * s[:, :, None, None].astype(x.dtype)


if __name__ == "__main__":
    key = jax.random.PRNGKey(0)
    kx, k1, k2, kx2, k3, k4 = jax.random.split(key, 6)

    # Case 1: small f32 config matching the module spec (fused single-pass path).
    N, C, H, W = 2, 4, 16, 16
    red = 4
    Cr = C // red  # = 1
    x = jax.random.normal(kx, (N, C, H, W), dtype=jnp.float32)
    # Conv2d weights (out_ch, in_ch, 1, 1) squeezed to (out_ch, in_ch).
    w1 = jax.random.normal(k1, (Cr, C), dtype=jnp.float32) * 0.5
    w2 = jax.random.normal(k2, (C, Cr), dtype=jnp.float32) * 0.5

    out = jax.block_until_ready(se_block(x, w1, w2))
    ref = se_block_reference(x, w1, w2)
    assert out.shape == (N, C, H, W)
    assert jnp.allclose(out, ref, atol=1e-5, rtol=1e-5), "fused path mismatch"

    # Case 2: force the two-pass tiled path (tiny budget) on the same input.
    out_t = jax.block_until_ready(se_block(x, w1, w2, budget_bytes=2048))
    assert jnp.allclose(out_t, ref, atol=1e-5, rtol=1e-5), "tiled path mismatch"

    # Case 3: bf16, non-128-multiple HW (14x14 -> masked-store path), odd batch.
    N2, C2, H2, W2, Cr2 = 5, 8, 14, 14, 2
    xb = jax.random.normal(kx2, (N2, C2, H2, W2), dtype=jnp.bfloat16)
    w1b = (jax.random.normal(k3, (Cr2, C2), jnp.float32) * 0.5).astype(jnp.bfloat16)
    w2b = (jax.random.normal(k4, (C2, Cr2), jnp.float32) * 0.5).astype(jnp.bfloat16)
    out_b = jax.block_until_ready(se_block(xb, w1b, w2b))
    ref_b = se_block_reference(xb, w1b, w2b)
    assert jnp.allclose(out_b.astype(jnp.float32), ref_b.astype(jnp.float32),
                        atol=3e-2, rtol=3e-2), "bf16 path mismatch"

    print("KERNEL_OK")
</pallas_src>

<mosaic_0001>
module attributes {stable_mosaic.version = 11 : i64} {
  func.func @_se_block_fused_kernel(%arg0: i32, %arg1: memref<1x4x256xf32, #tpu.memory_space<vmem>>, %arg2: memref<4x1xf32, #tpu.memory_space<vmem>>, %arg3: memref<1x4xf32, #tpu.memory_space<vmem>>, %arg4: memref<1x4x256xf32, #tpu.memory_space<vmem>>) attributes {dimension_semantics = [#tpu.dimension_semantics<parallel>], iteration_bounds = array<i64: 2>, scalar_prefetch = 0 : i64, scratch_operands = 0 : i64, tpu.core_type = #tpu.core_type<tc>, window_params = [{transform_indices = @transform_0, window_bounds = array<i64: 1, 4, 256>}, {pipeline_mode = #tpu.pipeline_mode<synchronous>, transform_indices = @transform_1, window_bounds = array<i64: 4, 1>}, {pipeline_mode = #tpu.pipeline_mode<synchronous>, transform_indices = @transform_2, window_bounds = array<i64: 1, 4>}, {transform_indices = @transform_3, window_bounds = array<i64: 1, 4, 256>}]} {
    %c0 = arith.constant 0 : index
    %c0_0 = arith.constant 0 : index
    %c0_1 = arith.constant 0 : index
    %0 = vector.load %arg1[%c0, %c0_0, %c0_1] : memref<1x4x256xf32, #tpu.memory_space<vmem>>, vector<1x4x256xf32>
    %cst = arith.constant dense<0.000000e+00> : vector<1x4xf32>
    %1 = vector.multi_reduction <add>, %0, %cst [2] : vector<1x4x256xf32> to vector<1x4xf32>
    %c0_2 = arith.constant 0 : index
    %c0_3 = arith.constant 0 : index
    %2 = vector.load %arg2[%c0_2, %c0_3] : memref<4x1xf32, #tpu.memory_space<vmem>>, vector<4x1xf32>
    %cst_4 = arith.constant dense<0.000000e+00> : vector<1x1xf32>
    %3 = tpu.matmul %1, %2, %cst_4 {dimension_numbers = #tpu.dot_dimension_numbers<[1], [0], [0], [1], [0, 0, 1, 1], [], []>} : vector<1x4xf32>, vector<4x1xf32>, vector<1x1xf32> -> vector<1x1xf32>
    %cst_5 = arith.constant 5.000000e-01 : f32
    %4 = vector.broadcast %cst_5 : f32 to vector<1x1xf32>
    %5 = arith.mulf %4, %3 : vector<1x1xf32>
    %cst_6 = arith.constant 0.707106769 : f32
    %6 = vector.broadcast %cst_6 : f32 to vector<1x1xf32>
    %7 = arith.mulf %3, %6 : vector<1x1xf32>
    %8 = math.erf %7 : vector<1x1xf32>
    %cst_7 = arith.constant 1.000000e+00 : f32
    %9 = vector.broadcast %cst_7 : f32 to vector<1x1xf32>
    %10 = arith.addf %9, %8 : vector<1x1xf32>
    %11 = arith.mulf %5, %10 : vector<1x1xf32>
    %c0_8 = arith.constant 0 : index
    %c0_9 = arith.constant 0 : index
    %12 = vector.load %arg3[%c0_8, %c0_9] : memref<1x4xf32, #tpu.memory_space<vmem>>, vector<1x4xf32>
    %cst_10 = arith.constant dense<0.000000e+00> : vector<1x4xf32>
    %13 = tpu.matmul %11, %12, %cst_10 {dimension_numbers = #tpu.dot_dimension_numbers<[1], [0], [0], [1], [0, 0, 1, 1], [], []>} : vector<1x1xf32>, vector<1x4xf32>, vector<1x4xf32> -> vector<1x4xf32>
    %14 = arith.negf %13 : vector<1x4xf32>
    %15 = math.exp %14 : vector<1x4xf32>
    %cst_11 = arith.constant 1.000000e+00 : f32
    %16 = vector.broadcast %cst_11 : f32 to vector<1x4xf32>
    %17 = arith.addf %16, %15 : vector<1x4xf32>
    %18 = arith.divf %16, %17 : vector<1x4xf32>
    %c0_12 = arith.constant 0 : index
    %c0_13 = arith.constant 0 : index
    %c0_14 = arith.constant 0 : index
    %19 = vector.load %arg1[%c0_12, %c0_13, %c0_14] : memref<1x4x256xf32, #tpu.memory_space<vmem>>, vector<1x4x256xf32>
    %20 = vector.shape_cast %18 : vector<1x4xf32> to vector<1x4x1xf32>
    %21 = vector.broadcast %20 : vector<1x4x1xf32> to vector<1x4x256xf32>
    %22 = arith.mulf %19, %21 : vector<1x4x256xf32>
    %c0_15 = arith.constant 0 : index
    %c0_16 = arith.constant 0 : index
    %c0_17 = arith.constant 0 : index
    %23 = vector.load %arg4[%c0_15, %c0_16, %c0_17] : memref<1x4x256xf32, #tpu.memory_space<vmem>>, vector<1x4x256xf32>
    tpu.vector_store %arg4[%c0_15, %c0_16, %c0_17], %22 {strides = array<i32>} : memref<1x4x256xf32, #tpu.memory_space<vmem>>, vector<1x4x256xf32>,
    return
  }
  func.func @transform_0(%arg0: i32) -> (i32, i32, i32) {
    %c0_i32 = arith.constant 0 : i32
    %c0_i32_0 = arith.constant 0 : i32
    %c0_i32_1 = arith.constant 0 : i32
    return %arg0, %c0_i32, %c0_i32_0 : i32, i32, i32
  }
  func.func @transform_1(%arg0: i32) -> (i32, i32) {
    %c0_i32 = arith.constant 0 : i32
    %c0_i32_0 = arith.constant 0 : i32
    %c0_i32_1 = arith.constant 0 : i32
    return %c0_i32, %c0_i32_0 : i32, i32
  }
  func.func @transform_2(%arg0: i32) -> (i32, i32) {
    %c0_i32 = arith.constant 0 : i32
    %c0_i32_0 = arith.constant 0 : i32
    %c0_i32_1 = arith.constant 0 : i32
    return %c0_i32, %c0_i32_0 : i32, i32
  }
  func.func @transform_3(%arg0: i32) -> (i32, i32, i32) {
    %c0_i32 = arith.constant 0 : i32
    %c0_i32_0 = arith.constant 0 : i32
    %c0_i32_1 = arith.constant 0 : i32
    return %arg0, %c0_i32, %c0_i32_0 : i32, i32, i32
  }
}

</mosaic_0001>

<llo_original>
// kernel: tpu_custom_call.1
$region0: #{tpu_custom_call.1}
  #allocation0 [shape = 'u32[]', space=smem, size = 0x4, offset = 0x4, fixed_abs, tag = 'smem constant byte address 0x4 - core index']
  #allocation1 [shape = 'u32[144,128]{1,0:T(1,128)}', space=vmem, size = 0x12000, scoped, tag = 'internal scratch']
  %s0 = inlined_call_operand.hbm [shape: f32[2,4,256], index: 0, kind: input, shape index: {}]
  %s1 = inlined_call_operand.vmem [shape: f32[4,1], index: 1, kind: input, shape index: {}]
  %s2 = inlined_call_operand.vmem [shape: f32[1,4], index: 2, kind: input, shape index: {}]
  %s3 = inlined_call_operand.hbm [shape: f32[2,4,256], index: 3, kind: output, shape index: {}]
  %s4 = sld [smem:[#allocation0]]
  $region49: #{tpu_custom_call.1} parent=0
    _
  %s6 = ssub.s32 1, %s4
  %s7 = scalar_select 0, %s6, %s4
  $region1: #{tpu_custom_call.1} parent=0
    #allocation2 [shape = 'u8[8192]{0}', space=vmem, size = 0x2000, scoped, tag = 'input window, operand 0']
    #allocation3 [shape = 's32[2]{0}', space=sflag, size = 0x8, scoped, tag = 'scoped memory for tpu_custom_call.1']
    #allocation4 [shape = 's32[2]{0}', space=sflag, size = 0x8, scoped, tag = 'scoped memory for tpu_custom_call.1']
    #allocation5 [shape = 'u8[8192]{0}', space=vmem, size = 0x2000, scoped, tag = 'output window, operand 0']
    %8 = vsyncpa [#allocation3], 0
    %s9 = scalar_lea.sflag [#allocation3], 1
    %10 = vsyncpa %s9, 0
    %11 = vsyncpa [#allocation4], 0
    %s12 = scalar_lea.sflag [#allocation4], 1
    %13 = vsyncpa %s12, 0
    loop: start=0, step=1, limit=4
    $region2: #{tpu_custom_call.1} parent=1 // loop_pre_header
      _
    $region3: #{tpu_custom_call.1} parent=1 // loop_header
      %s15 = sphi 0, %s19
      %p16 = scmp.ge.s32.totalorder %s15, 4
      %s25 = sphi 0, %s27
      %s28 = sphi 0, %s25
      %s29 = sphi 0, %s28
      %s45 = sphi 0, %s29
      %s49 = sphi 0, %s49
      %s51 = sphi 0, %s49
      %s52 = sphi 0, %s51
      %s66 = sphi 0, %s52
      %s70 = sphi 0, %s70
      %s72 = sphi 0, %s70
      %s73 = sphi 0, %s72
      %s87 = sphi 0, %s73
      %s93 = sphi 0, %s95
      %s96 = sphi 0, %s93
      %s97 = sphi 0, %s96
      %s113 = sphi 0, %s97
    $region4: #{tpu_custom_call.1} parent=1 // loop_header_branch
      %18 = sbr.rel (%p16) target = $region8
    $region5: #{tpu_custom_call.1} parent=1 // loop_body
      %s20 = ssub.s32 %s15, 1
      %s21 = ssub.s32 %s15, 2
      %s22 = sadd.s32 %s15, 1
      %s23 = ssub.s32 %s15, %s22
      %p24 = scmp.eq.s32.totalorder %s23, 0
      %s26 = sadd.s32 %s25, 1
      %s27 = scalar_select %p24, %s25, %s26
      %p30 = pneg %p24
      %p31 = scmp.eq.s32.totalorder %s15, 1
      %p32 = por %p30, %p31
      %p33 = scmp.ne.s32.totalorder %s25, %s28
      %p34 = scmp.eq.s32.totalorder %s15, 0
      %p35 = por %p33, %p34
      %p36 = scmp.ne.s32.totalorder %s25, %s28
      %p37 = scmp.eq.s32.totalorder %s20, 1
      %p38 = por %p36, %p37
      %p39 = scmp.ne.s32.totalorder %s28, %s29
      %p40 = scmp.eq.s32.totalorder %s20, 0
      %p41 = por %p39, %p40
      %p42 = scmp.ne.s32.totalorder %s28, %s29
      %p43 = scmp.eq.s32.totalorder %s21, 1
      %p44 = por %p42, %p43
      %p46 = scmp.ne.s32.totalorder %s29, %s45
      %p47 = scmp.eq.s32.totalorder %s21, 0
      %p48 = por %p46, %p47
      %s50 = sadd.s32 %s49, 1
      %p53 = scmp.eq.s32.totalorder %s15, 1
      %p54 = scmp.ne.s32.totalorder %s49, %s51
      %p55 = scmp.eq.s32.totalorder %s15, 0
      %p56 = por %p54, %p55
      %p57 = scmp.ne.s32.totalorder %s49, %s51
      %p58 = scmp.eq.s32.totalorder %s20, 1
      %p59 = por %p57, %p58
      %p60 = scmp.ne.s32.totalorder %s51, %s52
      %p61 = scmp.eq.s32.totalorder %s20, 0
      %p62 = por %p60, %p61
      %p63 = scmp.ne.s32.totalorder %s51, %s52
      %p64 = scmp.eq.s32.totalorder %s21, 1
      %p65 = por %p63, %p64
      %p67 = scmp.ne.s32.totalorder %s52, %s66
      %p68 = scmp.eq.s32.totalorder %s21, 0
      %p69 = por %p67, %p68
      %s71 = sadd.s32 %s70, 1
      %p74 = scmp.eq.s32.totalorder %s15, 1
      %p75 = scmp.ne.s32.totalorder %s70, %s72
      %p76 = scmp.eq.s32.totalorder %s15, 0
      %p77 = por %p75, %p76
      %p78 = scmp.ne.s32.totalorder %s70, %s72
      %p79 = scmp.eq.s32.totalorder %s20, 1
      %p80 = por %p78, %p79
      %p81 = scmp.ne.s32.totalorder %s72, %s73
      %p82 = scmp.eq.s32.totalorder %s20, 0
      %p83 = por %p81, %p82
      %p84 = scmp.ne.s32.totalorder %s72, %s73
      %p85 = scmp.eq.s32.totalorder %s21, 1
      %p86 = por %p84, %p85
      %p88 = scmp.ne.s32.totalorder %s73, %s87
      %p89 = scmp.eq.s32.totalorder %s21, 0
      %p90 = por %p88, %p89
      %s91 = ssub.s32 %s15, %s22
      %p92 = scmp.eq.s32.totalorder %s91, 0
      %s94 = sadd.s32 %s93, 1
      %s95 = scalar_select %p92, %s93, %s94
      %p98 = pneg %p92
      %p99 = scmp.eq.s32.totalorder %s15, 1
      %p100 = por %p98, %p99
      %p101 = scmp.ne.s32.totalorder %s93, %s96
      %p102 = scmp.eq.s32.totalorder %s15, 0
      %p103 = por %p101, %p102
      %p104 = scmp.ne.s32.totalorder %s93, %s96
      %p105 = scmp.eq.s32.totalorder %s20, 1
      %p106 = por %p104, %p105
      %p107 = scmp.ne.s32.totalorder %s96, %s97
      %p108 = scmp.eq.s32.totalorder %s20, 0
      %p109 = por %p107, %p108
      %p110 = scmp.ne.s32.totalorder %s96, %s97
      %p111 = scmp.eq.s32.totalorder %s21, 1
      %p112 = por %p110, %p111
      %p114 = scmp.ne.s32.totalorder %s97, %s113
      %p115 = scmp.eq.s32.totalorder %s21, 0
      %p116 = por %p114, %p115
      %p117 = scmp.le.s32.totalorder 1, %s15
      %p118 = scmp.lt.s32.totalorder %s15, 3
      %p119 = pnand %p117, %p118
      %p120 = pneg %p119
      // Predicated region
      $region9: #{tpu_custom_call.1} parent=5 // pred_check
        _
      $region10: #{tpu_custom_call.1} parent=5 // pred_check_branch
        %122 = sbr.rel (%p119) target = $region12
      $region11: #{tpu_custom_call.1} parent=5 // pred_region
        %s123 = ssub.s32 %s15, 1
        // Predicated region
        $region13: #{tpu_custom_call.1} parent=11 // pred_check
          %p124 = pneg %p62
        $region14: #{tpu_custom_call.1} parent=11 // pred_check_branch
          %126 = sbr.rel (%p124) target = $region16
        $region15: #{tpu_custom_call.1} parent=11 // pred_region
          _
        $region16: #{tpu_custom_call.1} parent=11 // pred_fallthru
          _
        // Predicated region
        $region17: #{tpu_custom_call.1} parent=11 // pred_check
          %p127 = pneg %p83
        $region18: #{tpu_custom_call.1} parent=11 // pred_check_branch
          %129 = sbr.rel (%p127) target = $region20
        $region19: #{tpu_custom_call.1} parent=11 // pred_region
          _
        $region20: #{tpu_custom_call.1} parent=11 // pred_fallthru
          _
      $region12: #{tpu_custom_call.1} parent=5 // pred_fallthru
        _
      %p130 = scmp.lt.s32.totalorder %s15, 2
      // Predicated region
      $region21: #{tpu_custom_call.1} parent=5 // pred_check
        %p131 = pneg %p130
      $region22: #{tpu_custom_call.1} parent=5 // pred_check_branch
        %133 = sbr.rel (%p131) target = $region24
      $region23: #{tpu_custom_call.1} parent=5 // pred_region
        // Predicated region
        $region25: #{tpu_custom_call.1} parent=23 // pred_check
          %p134 = pneg %p35
        $region26: #{tpu_custom_call.1} parent=23 // pred_check_branch
          %136 = sbr.rel (%p134) target = $region28
        $region27: #{tpu_custom_call.1} parent=23 // pred_region
          %s137 = sand.u32 %s25, 1
          %s138 = scalar_lea.sflag [#allocation3], %s137
          %s139 = sand.u32 %s25, 1
          %s140 = smul.addr %s139, 8
          %s141 = scalar_lea.vmem [#allocation2], %s140
          %s143 = ssub.s32 128, 128
          %144 = vsyncadd %s138, %s143
          %s145 = smul.addr %s15, 2
          %s146 = smul.addr %s145, 64
          %s147 = scalar_lea.hbm %s0, %s146
          %s149 = sshll.u32 %s141, 4
          %s150 = int_to_ptr.vmem [resolvable:$true] %s149
          %152 = dma.hbm_to_vmem [thread:$0]  %s147, 128, %s150, %s138
        $region28: #{tpu_custom_call.1} parent=23 // pred_fallthru
          _
      $region24: #{tpu_custom_call.1} parent=5 // pred_fallthru
        _
      %p153 = scmp.le.s32.totalorder 1, %s15
      %p154 = scmp.lt.s32.totalorder %s15, 3
      %p155 = pnand %p153, %p154
      %p156 = pneg %p155
      // Predicated region
      $region29: #{tpu_custom_call.1} parent=5 // pred_check
        _
      $region30: #{tpu_custom_call.1} parent=5 // pred_check_branch
        %158 = sbr.rel (%p155) target = $region32
      $region31: #{tpu_custom_call.1} parent=5 // pred_region
        %s159 = ssub.s32 %s15, 1
        %s160 = sand.u32 %s28, 1
        %s161 = scalar_lea.sflag [#allocation3], %s160
        %s162 = sand.u32 %s28, 1
        %s163 = smul.addr %s162, 8
        %s164 = scalar_lea.vmem [#allocation2], %s163
        // Predicated region
        $region33: #{tpu_custom_call.1} parent=31 // pred_check
          %p165 = pneg %p41
        $region34: #{tpu_custom_call.1} parent=31 // pred_check_branch
          %167 = sbr.rel (%p165) target = $region36
        $region35: #{tpu_custom_call.1} parent=31 // pred_region
          %168 = dma.done %s161, 128
        $region36: #{tpu_custom_call.1} parent=31 // pred_fallthru
          _
        %s169 = sand.u32 %s28, 1
        %s170 = scalar_lea.sflag [#allocation3], %s169
        %s171 = sand.u32 %s28, 1
        %s172 = smul.addr %s171, 8
        %s173 = scalar_lea.vmem [#allocation2], %s172
        %p174 = pneg %p41
        %p175 = pneg %p38
        %p176 = pneg %p62
        %p177 = pneg %p59
        %p178 = pneg %p83
        %p179 = pneg %p80
        %p180 = pneg %p109
        %p181 = pneg %p106
        %s182 = sand.u32 %s96, 1
        %s183 = scalar_lea.sflag [#allocation4], %s182
        %s184 = sand.u32 %s96, 1
        %s185 = smul.addr %s184, 8
        %s186 = scalar_lea.vmem [#allocation5], %s185
        %v187 = vld [vmem:[%s164] sm:$0xff]
        %v189 = vcombine.high %v187, %v187
        %vm191 = vcmask 1043456
        %v192 = vsel %vm191, %v187, 0.0
        %v193 = vsel %vm191, %v189, 0.0
        %v194 = vadd.f32 %v192, %v193
        %195 = vadd.xlane.f32.xlu0 %v194
        %v196 = vpop.xlane.xlu0 %195
        %v197 = vld [vmem:[%s1] sm:$0xf]
        %v199 = vlaneseq
        %v200 = vand.u32 %v199, 127
        %v201 = vlaneseq
        %v202 = vshrl.u32 %v201, 7
        %v203 = vsub.s32 %v200, %v202
        %v204 = vrot.slane %v196, %v203
        %vm205 = vcmask 31744
        %v206 = vsel %vm205, %v204, 0
        %v209 = vsel %vm191, %v197, 0
        %211 = vmatprep.subr.mxu0 0.0
        %212 = vmatpush1.msra.mxu0 %v209
        %213 = vmatprep.subr.mxu0 0.0
        %214 = vmatpush1.msra.mxu0 0.0
        %215 = vmatprep.subr.mxu0 0.0
        %216 = vmatpush1.msra.mxu0 0.0
        %217 = vmatprep.subr.mxu0 0.0
        %218 = vmatpush1.msra.mxu0 0.0
        %219 = vmatprep.subr.mxu0 0.0
        %220 = vmatpush1.msra.mxu0 0.0
        %221 = vmatprep.subr.mxu0 0.0
        %222 = vmatpush1.msra.mxu0 0.0
        %223 = vmatprep.subr.mxu0 0.0
        %224 = vmatpush1.msra.mxu0 0.0
        %225 = vmatprep.subr.mxu0 0.0
        %226 = vmatpush1.msra.mxu0 0.0
        %227 = vmatprep.subr.mxu0 0.0
        %228 = vmatpush1.msra.mxu0 0.0
        %229 = vmatprep.subr.mxu0 0.0
        %230 = vmatpush1.msra.mxu0 0.0
        %231 = vmatprep.subr.mxu0 0.0
        %232 = vmatpush1.msra.mxu0 0.0
        %233 = vmatprep.subr.mxu0 0.0
        %234 = vmatpush1.msra.mxu0 0.0
        %235 = vmatprep.subr.mxu0 0.0
        %236 = vmatpush1.msra.mxu0 0.0
        %237 = vmatprep.subr.mxu0 0.0
        %238 = vmatpush1.msra.mxu0 0.0
        %239 = vmatprep.subr.mxu0 0.0
        %240 = vmatpush1.msra.mxu0 0.0
        %241 = vmatprep.subr.mxu0 0.0
        %242 = vmatpush1.msra.mxu0 0.0
        %243 = vmatprep.subr.mxu0 0.0
        %244 = vmatpush1.msra.mxu0 0.0
        %245 = vmatprep.subr.mxu0 0.0
        %246 = vmatpush1.msra.mxu0 0.0
        %247 = vmatprep.subr.mxu0 0.0
        %248 = vmatpush1.msra.mxu0 0.0
        %249 = vmatprep.subr.mxu0 0.0
        %250 = vmatpush1.msra.mxu0 0.0
        %251 = vmatprep.subr.mxu0 0.0
        %252 = vmatpush1.msra.mxu0 0.0
        %253 = vmatprep.subr.mxu0 0.0
        %254 = vmatpush1.msra.mxu0 0.0
        %255 = vmatprep.subr.mxu0 0.0
        %256 = vmatpush1.msra.mxu0 0.0
        %257 = vmatprep.subr.mxu0 0.0
        %258 = vmatpush1.msra.mxu0 0.0
        %259 = vmatprep.subr.mxu0 0.0
        %260 = vmatpush1.msra.mxu0 0.0
        %261 = vmatprep.subr.mxu0 0.0
        %262 = vmatpush1.msra.mxu0 0.0
        %263 = vmatprep.subr.mxu0 0.0
        %264 = vmatpush1.msra.mxu0 0.0
        %265 = vmatprep.subr.mxu0 0.0
        %266 = vmatpush1.msra.mxu0 0.0
        %267 = vmatprep.subr.mxu0 0.0
        %268 = vmatpush1.msra.mxu0 0.0
        %269 = vmatprep.subr.mxu0 0.0
        %270 = vmatpush1.msra.mxu0 0.0
        %271 = vmatprep.subr.mxu0 0.0
        %272 = vmatpush1.msra.mxu0 0.0
        %273 = vmatprep.subr.mxu0 0.0
        %274 = vmatpush1.msra.mxu0 0.0
        %275 = vmatprep.mubr.f32.mxu0 0.0
        %276 = vmatmul.mubr.f32.gmra.mrb[0].mxu0 %v206
        %v277 = vpop.f32.mrb[0].mxu0
        %v278 = vadd.f32 0.0, %v277
        %v279 = vpop.f32.mrb[0].mxu0
        %280 = vdwg.mxu0
        %v281 = vmul.f32 %v278, 0.5
        %v282 = vmul.f32 %v278, 0.70710677
        %v283 = verf.f32.pop %v282
        %v284 = vadd.f32 %v283, 1.0
        %v285 = vmul.f32 %v281, %v284
        %v286 = vld [vmem:[%s2] sm:$0x1]
        %vm287 = vcmask 7168
        %v289 = vsel %vm287, %v285, 0
        %vm291 = vcmask 1040384
        %v293 = vsel %vm291, %v286, 0
        %295 = vmatprep.subr.mxu0 0.0
        %296 = vmatpush1.msra.mxu0 %v293
        %297 = vmatprep.subr.mxu0 0.0
        %298 = vmatpush1.msra.mxu0 0.0
        %299 = vmatprep.subr.mxu0 0.0
        %300 = vmatpush1.msra.mxu0 0.0
        %301 = vmatprep.subr.mxu0 0.0
        %302 = vmatpush1.msra.mxu0 0.0
        %303 = vmatprep.subr.mxu0 0.0
        %304 = vmatpush1.msra.mxu0 0.0
        %305 = vmatprep.subr.mxu0 0.0
        %306 = vmatpush1.msra.mxu0 0.0
        %307 = vmatprep.subr.mxu0 0.0
        %308 = vmatpush1.msra.mxu0 0.0
        %309 = vmatprep.subr.mxu0 0.0
        %310 = vmatpush1.msra.mxu0 0.0
        %311 = vmatprep.subr.mxu0 0.0
        %312 = vmatpush1.msra.mxu0 0.0
        %313 = vmatprep.subr.mxu0 0.0
        %314 = vmatpush1.msra.mxu0 0.0
        %315 = vmatprep.subr.mxu0 0.0
        %316 = vmatpush1.msra.mxu0 0.0
        %317 = vmatprep.subr.mxu0 0.0
        %318 = vmatpush1.msra.mxu0 0.0
        %319 = vmatprep.subr.mxu0 0.0
        %320 = vmatpush1.msra.mxu0 0.0
        %321 = vmatprep.subr.mxu0 0.0
        %322 = vmatpush1.msra.mxu0 0.0
        %323 = vmatprep.subr.mxu0 0.0
        %324 = vmatpush1.msra.mxu0 0.0
        %325 = vmatprep.subr.mxu0 0.0
        %326 = vmatpush1.msra.mxu0 0.0
        %327 = vmatprep.subr.mxu0 0.0
        %328 = vmatpush1.msra.mxu0 0.0
        %329 = vmatprep.subr.mxu0 0.0
        %330 = vmatpush1.msra.mxu0 0.0
        %331 = vmatprep.subr.mxu0 0.0
        %332 = vmatpush1.msra.mxu0 0.0
        %333 = vmatprep.subr.mxu0 0.0
        %334 = vmatpush1.msra.mxu0 0.0
        %335 = vmatprep.subr.mxu0 0.0
        %336 = vmatpush1.msra.mxu0 0.0
        %337 = vmatprep.subr.mxu0 0.0
        %338 = vmatpush1.msra.mxu0 0.0
        %339 = vmatprep.subr.mxu0 0.0
        %340 = vmatpush1.msra.mxu0 0.0
        %341 = vmatprep.subr.mxu0 0.0
        %342 = vmatpush1.msra.mxu0 0.0
        %343 = vmatprep.subr.mxu0 0.0
        %344 = vmatpush1.msra.mxu0 0.0
        %345 = vmatprep.subr.mxu0 0.0
        %346 = vmatpush1.msra.mxu0 0.0
        %347 = vmatprep.subr.mxu0 0.0
        %348 = vmatpush1.msra.mxu0 0.0
        %349 = vmatprep.subr.mxu0 0.0
        %350 = vmatpush1.msra.mxu0 0.0
        %351 = vmatprep.subr.mxu0 0.0
        %352 = vmatpush1.msra.mxu0 0.0
        %353 = vmatprep.subr.mxu0 0.0
        %354 = vmatpush1.msra.mxu0 0.0
        %355 = vmatprep.subr.mxu0 0.0
        %356 = vmatpush1.msra.mxu0 0.0
        %357 = vmatprep.subr.mxu0 0.0
        %358 = vmatpush1.msra.mxu0 0.0
        %359 = vmatprep.mubr.f32.mxu0 0.0
        %360 = vmatmul.mubr.f32.gmra.mrb[0].mxu0 %v289
        %v361 = vpop.f32.mrb[0].mxu0
        %v362 = vadd.f32 0.0, %v361
        %v363 = vpop.f32.mrb[0].mxu0
        %364 = vdwg.mxu0
        %v365 = vxor.u32 %v362, 2147483648
        %v366 = vmul.f32 %v365, 1.442695
        %v367 = vpow.pop %v366
        %v368 = vadd.f32 %v367, 1.0
        %v369 = vrcp.pop %v368
        %v370 = vmul.f32 1.0, %v369
        %v371 = vlaneseq
        %v372 = vshrl.u32 %v371, 7
        %v373 = vsub.s32 0, %v372
        %v374 = vrot.slane %v370, %v373
        %376 = vbcast.lane.b32.xlu0 %v374, 256
        %v377 = vpop.permute.xlu0 %376
        %v380 = vunpack.c.l.s4 839922192
        %v381 = vunpack.c.0.s8 %v380
        %v382 = vlaneseq
        %v383 = vshrl.u32 %v382, 7
        %v384 = vsub.s32 %v381, %v383
        %v385 = vrot.slane %v377, %v384
        %v387 = vmul.f32 %v187, %v385
        %388 = vst [vmem:[%s186] sm:$0xff] %v387
        %s389 = sand.u32 %s96, 1
        %s390 = scalar_lea.sflag [#allocation4], %s389
        %s391 = sand.u32 %s96, 1
        %s392 = smul.addr %s391, 8
        %s393 = scalar_lea.vmem [#allocation5], %s392
        // Predicated region
        $region37: #{tpu_custom_call.1} parent=31 // pred_check
          %p394 = pneg %p106
        $region38: #{tpu_custom_call.1} parent=31 // pred_check_branch
          %396 = sbr.rel (%p394) target = $region40
        $region39: #{tpu_custom_call.1} parent=31 // pred_region
          %s398 = ssub.s32 128, 128
          %399 = vsyncadd %s390, %s398
          %s400 = smul.addr %s20, 2
          %s401 = smul.addr %s400, 64
          %s402 = scalar_lea.hbm %s3, %s401
          %s404 = sshll.u32 %s393, 4
          %s405 = int_to_ptr.vmem [resolvable:$true] %s404
          %407 = dma.vmem_to_hbm [thread:$0]  %s405, 128, %s402, %s390
        $region40: #{tpu_custom_call.1} parent=31 // pred_fallthru
          _
      $region32: #{tpu_custom_call.1} parent=5 // pred_fallthru
        _
      %p408 = scmp.le.s32.totalorder 2, %s15
      // Predicated region
      $region41: #{tpu_custom_call.1} parent=5 // pred_check
        %p409 = pneg %p408
      $region42: #{tpu_custom_call.1} parent=5 // pred_check_branch
        %411 = sbr.rel (%p409) target = $region44
      $region43: #{tpu_custom_call.1} parent=5 // pred_region
        %s412 = ssub.s32 %s15, 2
        // Predicated region
        $region45: #{tpu_custom_call.1} parent=43 // pred_check
          %p413 = pneg %p112
        $region46: #{tpu_custom_call.1} parent=43 // pred_check_branch
          %415 = sbr.rel (%p413) target = $region48
        $region47: #{tpu_custom_call.1} parent=43 // pred_region
          %s416 = sand.u32 %s97, 1
          %s417 = scalar_lea.sflag [#allocation4], %s416
          %s418 = sand.u32 %s97, 1
          %s419 = smul.addr %s418, 8
          %s420 = scalar_lea.vmem [#allocation5], %s419
          %421 = dma.done %s417, 128
        $region48: #{tpu_custom_call.1} parent=43 // pred_fallthru
          _
      $region44: #{tpu_custom_call.1} parent=5 // pred_fallthru
        _
    $region6: #{tpu_custom_call.1} parent=1 // loop_footer
      %s19 = sadd.s32 1, %s15
    $region7: #{tpu_custom_call.1} parent=1 // loop_footer_branch
      %14 = sbr.rel target = $region3
    $region8: #{tpu_custom_call.1} parent=1 // loop_exit
      _
    %422 = vsyncpa [#allocation3], 1
    %s423 = scalar_lea.sflag [#allocation3], 1
    %424 = vsyncpa %s423, 1
    %425 = vsyncpa [#allocation4], 1
    %s426 = scalar_lea.sflag [#allocation4], 1
    %427 = vsyncpa %s426, 1

</llo_original>
